<compile_context>
chip_gen: v5e
topology: v5e:2x2
jax: 0.10.0
libtpu: 0.0.40
codegen_flags: <defaults>
</compile_context>

<pallas_src>
import jax
import jax.numpy as jnp
from jax.experimental import pallas as pl
from jax.experimental.pallas import tpu as pltpu


# ---------------------------------------------------------------------------
# Kernels
# ---------------------------------------------------------------------------

def gcn_layer_kernel(a_ref, h_ref, w_ref, b_ref, out_ref, acc_ref):
    """One GCN layer: out = relu((A_hat @ H) @ W + b), tiled over A rows.

    grid = (row_tiles, k_tiles); k (reduction over A columns) is the last,
    "arbitrary" axis. acc_ref is an f32 (tm, F_in) scratch accumulating the
    running A_tile @ H_tile sum; the cheap (tm,F_in)x(F_in,F_out) matmul,
    bias add and ReLU run once at the final reduction step.
    """
    @pl.when(pl.program_id(1) == 0)
    def _():
        acc_ref[...] = jnp.zeros_like(acc_ref)

    # bf16 x bf16 -> f32 accumulate on the MXU (dominant N^2 * F_in term).
    acc_ref[...] += jnp.dot(a_ref[...], h_ref[...],
                            preferred_element_type=jnp.float32)

    @pl.when(pl.program_id(1) == pl.num_programs(1) - 1)
    def _():
        hw = jnp.dot(acc_ref[...], w_ref[...],
                     preferred_element_type=jnp.float32)
        out_ref[...] = jnp.maximum(hw + b_ref[...], 0.0).astype(out_ref.dtype)


def head_kernel(p_ref, h_ref, wl1_ref, bl1_ref, wl2_ref, bl2_ref, out_ref):
    """global_mean_pool (as P @ H) followed by Linear -> ReLU -> Linear.

    The second Linear is zero-padded to 128 output lanes so the final store
    is lane-dense; the wrapper slices back to num_tasks.
    """
    pooled = jnp.dot(p_ref[...], h_ref[...],
                     preferred_element_type=jnp.float32)              # (G, 8h)
    z = jnp.maximum(
        jnp.dot(pooled, wl1_ref[...], preferred_element_type=jnp.float32)
        + bl1_ref[...], 0.0)                                           # (G, 256)
    out_ref[...] = (jnp.dot(z, wl2_ref[...],
                            preferred_element_type=jnp.float32)
                    + bl2_ref[...])                                    # (G, 128)


# ---------------------------------------------------------------------------
# pallas_call wrappers
# ---------------------------------------------------------------------------

def _round_up(x, m):
    return ((x + m - 1) // m) * m


def _full_spec(shape):
    # full-array block, single grid step (head kernel only; everything small)
    return pl.BlockSpec(shape, lambda i: (0,) * len(shape))


def gcn_layer(a_bf16, h_bf16, w, b, *, tm, tk):
    n_pad = a_bf16.shape[0]
    f_in = h_bf16.shape[1]
    f_out = w.shape[1]
    grid = (n_pad // tm, n_pad // tk)
    ce = pl.CostEstimate(
        flops=2 * n_pad * n_pad * f_in + 2 * n_pad * f_in * f_out,
        transcendentals=0,
        bytes_accessed=(a_bf16.size * 2 + h_bf16.size * 2
                        + w.size * 4 + b.size * 4 + n_pad * f_out * 2))
    return pl.pallas_call(
        gcn_layer_kernel,
        out_shape=jax.ShapeDtypeStruct((n_pad, f_out), jnp.bfloat16),
        grid_spec=pltpu.PrefetchScalarGridSpec(
            num_scalar_prefetch=0,
            grid=grid,
            in_specs=[
                pl.BlockSpec((tm, tk), lambda i, k: (i, k)),        # A tile
                pl.BlockSpec((tk, f_in), lambda i, k: (k, 0)),      # H row-chunk
                pl.BlockSpec((f_in, f_out), lambda i, k: (0, 0)),   # W (resident)
                pl.BlockSpec((1, f_out), lambda i, k: (0, 0)),      # bias
            ],
            out_specs=pl.BlockSpec((tm, f_out), lambda i, k: (i, 0)),
            scratch_shapes=[pltpu.VMEM((tm, f_in), jnp.float32)],
        ),
        compiler_params=pltpu.CompilerParams(
            dimension_semantics=("parallel", "arbitrary")),
        cost_estimate=ce,
    )(a_bf16, h_bf16, w, b)


def head(pool_bf16, h_bf16, wl1, bl1, wl2_pad, bl2_pad):
    g, n_pad = pool_bf16.shape
    f_h = h_bf16.shape[1]
    lanes = wl2_pad.shape[1]
    ce = pl.CostEstimate(
        flops=2 * (g * n_pad * f_h + g * f_h * wl1.shape[1]
                   + g * wl1.shape[1] * lanes),
        transcendentals=0,
        bytes_accessed=(pool_bf16.size * 2 + h_bf16.size * 2
                        + (wl1.size + bl1.size + wl2_pad.size + bl2_pad.size) * 4
                        + g * lanes * 4))
    args = (pool_bf16, h_bf16, wl1, bl1, wl2_pad, bl2_pad)
    return pl.pallas_call(
        head_kernel,
        out_shape=jax.ShapeDtypeStruct((g, lanes), jnp.float32),
        grid=(1,),
        in_specs=[_full_spec(a.shape) for a in args],
        out_specs=_full_spec((g, lanes)),
        compiler_params=pltpu.CompilerParams(
            dimension_semantics=("arbitrary",)),
        cost_estimate=ce,
    )(*args)


# ---------------------------------------------------------------------------
# Plain-JAX glue (adjacency / pooling matrices, parameters)
# ---------------------------------------------------------------------------

def build_gcn_adjacency(edge_index, num_nodes):
    """Dense D^{-1/2} (A + I) D^{-1/2}, matching torch_geometric GCNConv."""
    src, dst = edge_index[0], edge_index[1]
    a = jnp.zeros((num_nodes, num_nodes), jnp.float32).at[dst, src].add(1.0)
    a = a + jnp.eye(num_nodes, dtype=jnp.float32)            # self-loops
    deg = a.sum(axis=1)
    d_inv_sqrt = jnp.where(deg > 0, 1.0 / jnp.sqrt(deg), 0.0)
    return d_inv_sqrt[:, None] * a * d_inv_sqrt[None, :]


def build_mean_pool_matrix(batch, num_graphs):
    onehot = (jnp.arange(num_graphs)[:, None] == batch[None, :]).astype(jnp.float32)
    counts = onehot.sum(axis=1, keepdims=True)
    return onehot / jnp.maximum(counts, 1.0)                  # (G, N)


def init_params(key, num_node_features, hidden, num_tasks):
    """Deterministic Glorot-style init; shapes match the torch module."""
    dims = [(num_node_features, hidden),
            (hidden, hidden * 2),
            (hidden * 2, hidden * 4),
            (hidden * 4, hidden * 8),
            (hidden * 8, 256),
            (256, num_tasks)]
    params = []
    keys = jax.random.split(key, len(dims))
    for k, (fan_in, fan_out) in zip(keys, dims):
        scale = (2.0 / (fan_in + fan_out)) ** 0.5
        w = scale * jax.random.normal(k, (fan_in, fan_out), jnp.float32)
        b = jnp.zeros((1, fan_out), jnp.float32)              # 2D bias for TPU layout
        params.extend([w, b])
    return tuple(params)


# ---------------------------------------------------------------------------
# Full forward
# ---------------------------------------------------------------------------

def synthetic_gcn_forward(x, edge_index, batch, params, num_graphs, num_tasks):
    (w1, b1, w2, b2, w3, b3, w4, b4, wl1, bl1, wl2, bl2) = params
    n = x.shape[0]

    # Glue: dense normalized adjacency + mean-pool matrix.
    a_hat = build_gcn_adjacency(edge_index, n)                 # (N, N)
    pool_mat = build_mean_pool_matrix(batch, num_graphs)       # (G, N)

    # Pad the node dimension to an MXU/lane-friendly tile multiple.
    tile = 512 if n >= 512 else 128
    n_pad = _round_up(n, tile)
    a_pad = jnp.zeros((n_pad, n_pad), jnp.float32).at[:n, :n].set(a_hat)
    x_pad = jnp.zeros((n_pad, x.shape[1]), jnp.float32).at[:n, :].set(x)
    p_pad = jnp.zeros((num_graphs, n_pad), jnp.float32).at[:, :n].set(pool_mat)
    # Padded A rows/cols and padded P columns are zero, so padding never
    # contaminates real rows or the pooled result.

    # bf16 at the kernel boundary; MXU accumulation stays f32 inside.
    a_bf16 = a_pad.astype(jnp.bfloat16)
    p_bf16 = p_pad.astype(jnp.bfloat16)
    h = x_pad.astype(jnp.bfloat16)

    # 4 row-tiled GCN layers:  h <- relu((A_hat @ h) @ W + b)
    for w, b in ((w1, b1), (w2, b2), (w3, b3), (w4, b4)):
        h = gcn_layer(a_bf16, h, w, b, tm=tile, tk=tile)

    # Lane-dense head: pad the final Linear to 128 output lanes.
    lanes = max(128, _round_up(num_tasks, 128))
    wl2_pad = jnp.zeros((wl2.shape[0], lanes), jnp.float32).at[:, :num_tasks].set(wl2)
    bl2_pad = jnp.zeros((1, lanes), jnp.float32).at[:, :num_tasks].set(bl2)

    out_full = head(p_bf16, h, wl1, bl1, wl2_pad, bl2_pad)     # (G, 128)
    return out_full[:, :num_tasks]                             # (G, num_tasks)


def reference_forward(x, edge_index, batch, params, num_graphs):
    """Pure-JAX f32 reference with identical semantics."""
    (w1, b1, w2, b2, w3, b3, w4, b4, wl1, bl1, wl2, bl2) = params
    a_hat = build_gcn_adjacency(edge_index, x.shape[0])
    pool = build_mean_pool_matrix(batch, num_graphs)
    h = x
    for w, b in ((w1, b1), (w2, b2), (w3, b3), (w4, b4)):
        h = jnp.maximum(a_hat @ h @ w + b, 0.0)
    g = pool @ h
    z = jnp.maximum(g @ wl1 + bl1, 0.0)
    return z @ wl2 + bl2


# ---------------------------------------------------------------------------
# Demo
# ---------------------------------------------------------------------------

if __name__ == "__main__":
    # Small synthetic problem: 2 graphs x 16 nodes, ring topology per graph.
    NUM_NODE_FEATURES = 8
    HIDDEN = 8
    NUM_TASKS = 4
    NODES_PER_GRAPH = 16
    NUM_GRAPHS = 2
    N = NODES_PER_GRAPH * NUM_GRAPHS

    key = jax.random.PRNGKey(0)
    k_x, k_p = jax.random.split(key)

    # Node features
    x = jax.random.normal(k_x, (N, NUM_NODE_FEATURES), jnp.float32)

    # Bidirectional ring edges inside each graph
    src_list, dst_list = [], []
    for g in range(NUM_GRAPHS):
        base = g * NODES_PER_GRAPH
        for i in range(NODES_PER_GRAPH):
            u = base + i
            v = base + (i + 1) % NODES_PER_GRAPH
            src_list += [u, v]
            dst_list += [v, u]
    edge_index = jnp.array([src_list, dst_list], dtype=jnp.int32)   # (2, 64)

    # batch vector: node -> graph id
    batch = jnp.repeat(jnp.arange(NUM_GRAPHS, dtype=jnp.int32), NODES_PER_GRAPH)

    # Deterministic parameters
    params = init_params(k_p, NUM_NODE_FEATURES, HIDDEN, NUM_TASKS)

    out = synthetic_gcn_forward(x, edge_index, batch, params,
                                NUM_GRAPHS, NUM_TASKS)
    out = jax.block_until_ready(out)

    assert out.shape == (NUM_GRAPHS, NUM_TASKS)
    assert jnp.all(jnp.isfinite(out))

    # Validate the bf16-input kernel against the f32 pure-JAX reference.
    ref = reference_forward(x, edge_index, batch, params, NUM_GRAPHS)
    max_err = float(jnp.max(jnp.abs(out - ref)))
    assert max_err < 5e-2, f"mismatch vs f32 reference: max_err={max_err}"

    print("KERNEL_OK")
</pallas_src>

<mosaic_0001>
module attributes {stable_mosaic.version = 11 : i64} {
  func.func @gcn_layer_kernel(%arg0: i32, %arg1: i32, %arg2: memref<128x128xbf16, #tpu.memory_space<vmem>>, %arg3: memref<128x8xbf16, #tpu.memory_space<vmem>>, %arg4: memref<8x8xf32, #tpu.memory_space<vmem>>, %arg5: memref<1x8xf32, #tpu.memory_space<vmem>>, %arg6: memref<128x8xbf16, #tpu.memory_space<vmem>>, %arg7: memref<128x8xf32, #tpu.memory_space<vmem>>) attributes {dimension_semantics = [#tpu.dimension_semantics<parallel>, #tpu.dimension_semantics<arbitrary>], iteration_bounds = array<i64: 1, 1>, scalar_prefetch = 0 : i64, scratch_operands = 1 : i64, tpu.core_type = #tpu.core_type<tc>, window_params = [{transform_indices = @transform_0, window_bounds = array<i64: 128, 128>}, {transform_indices = @transform_1, window_bounds = array<i64: 128, 8>}, {pipeline_mode = #tpu.pipeline_mode<synchronous>, transform_indices = @transform_2, window_bounds = array<i64: 8, 8>}, {pipeline_mode = #tpu.pipeline_mode<synchronous>, transform_indices = @transform_3, window_bounds = array<i64: 1, 8>}, {transform_indices = @transform_4, window_bounds = array<i64: 128, 8>}]} {
    %c0_i32 = arith.constant 0 : i32
    %0 = arith.cmpi eq, %arg1, %c0_i32 : i32
    %1 = arith.extui %0 : i1 to i32
    %c0_i32_0 = arith.constant 0 : i32
    %2 = arith.cmpi ne, %1, %c0_i32_0 : i32
    scf.if %2 {
      %cst_10 = arith.constant 0.000000e+00 : f32
      %12 = vector.broadcast %cst_10 : f32 to vector<128x8xf32>
      %c0_11 = arith.constant 0 : index
      %c0_12 = arith.constant 0 : index
      %13 = vector.load %arg7[%c0_11, %c0_12] : memref<128x8xf32, #tpu.memory_space<vmem>>, vector<128x8xf32>
      tpu.vector_store %arg7[%c0_11, %c0_12], %12 {strides = array<i32>} : memref<128x8xf32, #tpu.memory_space<vmem>>, vector<128x8xf32>,
    } else {
    }
    %c0 = arith.constant 0 : index
    %c0_1 = arith.constant 0 : index
    %3 = vector.load %arg7[%c0, %c0_1] : memref<128x8xf32, #tpu.memory_space<vmem>>, vector<128x8xf32>
    %c0_2 = arith.constant 0 : index
    %c0_3 = arith.constant 0 : index
    %4 = vector.load %arg2[%c0_2, %c0_3] : memref<128x128xbf16, #tpu.memory_space<vmem>>, vector<128x128xbf16>
    %c0_4 = arith.constant 0 : index
    %c0_5 = arith.constant 0 : index
    %5 = vector.load %arg3[%c0_4, %c0_5] : memref<128x8xbf16, #tpu.memory_space<vmem>>, vector<128x8xbf16>
    %cst = arith.constant dense<0.000000e+00> : vector<128x8xf32>
    %6 = tpu.matmul %4, %5, %cst {dimension_numbers = #tpu.dot_dimension_numbers<[1], [0], [0], [1], [0, 0, 1, 1], [], []>} : vector<128x128xbf16>, vector<128x8xbf16>, vector<128x8xf32> -> vector<128x8xf32>
    %7 = arith.addf %3, %6 : vector<128x8xf32>
    %c0_6 = arith.constant 0 : index
    %c0_7 = arith.constant 0 : index
    %8 = vector.load %arg7[%c0_6, %c0_7] : memref<128x8xf32, #tpu.memory_space<vmem>>, vector<128x8xf32>
    tpu.vector_store %arg7[%c0_6, %c0_7], %7 {strides = array<i32>} : memref<128x8xf32, #tpu.memory_space<vmem>>, vector<128x8xf32>,
    %c0_i32_8 = arith.constant 0 : i32
    %9 = arith.cmpi eq, %arg1, %c0_i32_8 : i32
    %10 = arith.extui %9 : i1 to i32
    %c0_i32_9 = arith.constant 0 : i32
    %11 = arith.cmpi ne, %10, %c0_i32_9 : i32
    scf.if %11 {
      %c0_10 = arith.constant 0 : index
      %c0_11 = arith.constant 0 : index
      %12 = vector.load %arg7[%c0_10, %c0_11] : memref<128x8xf32, #tpu.memory_space<vmem>>, vector<128x8xf32>
      %c0_12 = arith.constant 0 : index
      %c0_13 = arith.constant 0 : index
      %13 = vector.load %arg4[%c0_12, %c0_13] : memref<8x8xf32, #tpu.memory_space<vmem>>, vector<8x8xf32>
      %cst_14 = arith.constant dense<0.000000e+00> : vector<128x8xf32>
      %14 = tpu.matmul %12, %13, %cst_14 {dimension_numbers = #tpu.dot_dimension_numbers<[1], [0], [0], [1], [0, 0, 1, 1], [], []>} : vector<128x8xf32>, vector<8x8xf32>, vector<128x8xf32> -> vector<128x8xf32>
      %c0_15 = arith.constant 0 : index
      %c0_16 = arith.constant 0 : index
      %15 = vector.load %arg5[%c0_15, %c0_16] : memref<1x8xf32, #tpu.memory_space<vmem>>, vector<1x8xf32>
      %16 = vector.broadcast %15 : vector<1x8xf32> to vector<128x8xf32>
      %17 = arith.addf %14, %16 : vector<128x8xf32>
      %cst_17 = arith.constant 0.000000e+00 : f32
      %18 = vector.broadcast %cst_17 : f32 to vector<128x8xf32>
      %19 = arith.maximumf %17, %18 : vector<128x8xf32>
      %20 = arith.truncf %19 : vector<128x8xf32> to vector<128x8xbf16>
      %c0_18 = arith.constant 0 : index
      %c0_19 = arith.constant 0 : index
      %21 = vector.load %arg6[%c0_18, %c0_19] : memref<128x8xbf16, #tpu.memory_space<vmem>>, vector<128x8xbf16>
      tpu.vector_store %arg6[%c0_18, %c0_19], %20 {strides = array<i32>} : memref<128x8xbf16, #tpu.memory_space<vmem>>, vector<128x8xbf16>,
    } else {
    }
    return
  }
  func.func @transform_0(%arg0: i32, %arg1: i32) -> (i32, i32) {
    %c0_i32 = arith.constant 0 : i32
    return %arg0, %arg1 : i32, i32
  }
  func.func @transform_1(%arg0: i32, %arg1: i32) -> (i32, i32) {
    %c0_i32 = arith.constant 0 : i32
    %c0_i32_0 = arith.constant 0 : i32
    return %arg1, %c0_i32 : i32, i32
  }
  func.func @transform_2(%arg0: i32, %arg1: i32) -> (i32, i32) {
    %c0_i32 = arith.constant 0 : i32
    %c0_i32_0 = arith.constant 0 : i32
    %c0_i32_1 = arith.constant 0 : i32
    return %c0_i32, %c0_i32_0 : i32, i32
  }
  func.func @transform_3(%arg0: i32, %arg1: i32) -> (i32, i32) {
    %c0_i32 = arith.constant 0 : i32
    %c0_i32_0 = arith.constant 0 : i32
    %c0_i32_1 = arith.constant 0 : i32
    return %c0_i32, %c0_i32_0 : i32, i32
  }
  func.func @transform_4(%arg0: i32, %arg1: i32) -> (i32, i32) {
    %c0_i32 = arith.constant 0 : i32
    %c0_i32_0 = arith.constant 0 : i32
    return %arg0, %c0_i32 : i32, i32
  }
}

</mosaic_0001>

<llo_original>
// kernel: tpu_custom_call.1
$region0: #{tpu_custom_call.1}
  #allocation0 [shape = 'u32[]', space=smem, size = 0x4, offset = 0x4, fixed_abs, tag = 'smem constant byte address 0x4 - core index']
  #allocation1 [shape = 'u32[72,128]{1,0:T(1,128)}', space=vmem, size = 0x9000, scoped, tag = 'internal scratch']
  #allocation2 [shape = 'f32[128,8]{1,0:T(8,128)}', space=vmem, size = 0x10000, scoped, tag = 'scratch operand']
  %s0 = inlined_call_operand.vmem [shape: bf16[128,128], index: 0, kind: input, shape index: {}]
  %s1 = inlined_call_operand.vmem [shape: bf16[128,8], index: 1, kind: input, shape index: {}]
  %s2 = inlined_call_operand.hbm [shape: f32[8,8], index: 2, kind: input, shape index: {}]
  %s3 = inlined_call_operand.vmem [shape: f32[1,8], index: 3, kind: input, shape index: {}]
  %s4 = inlined_call_operand.vmem [shape: bf16[128,8], index: 4, kind: output, shape index: {}]
  %s5 = sld [smem:[#allocation0]]
  $region38: #{tpu_custom_call.1} parent=0
    _
  %s7 = ssub.s32 1, %s5
  %s8 = scalar_select 0, %s7, %s5
  $region1: #{tpu_custom_call.1} parent=0
    #allocation3 [shape = 'u8[4096]{0}', space=vmem, size = 0x1000, scoped, tag = 'input window, operand 2, single buffered']
    #allocation4 [shape = 's32[1]{0}', space=sflag, size = 0x4, scoped, tag = 'scoped memory for tpu_custom_call.1']
    %9 = vsyncpa [#allocation4], 0
    // Predicated region
    $region2: #{tpu_custom_call.1} parent=1 // pred_check
      _
    $region3: #{tpu_custom_call.1} parent=1 // pred_check_branch
      %11 = sbr.rel (0) target = $region5
    $region4: #{tpu_custom_call.1} parent=1 // pred_region
      _
    $region5: #{tpu_custom_call.1} parent=1 // pred_fallthru
      _
    // Predicated region
    $region6: #{tpu_custom_call.1} parent=1 // pred_check
      _
    $region7: #{tpu_custom_call.1} parent=1 // pred_check_branch
      %13 = sbr.rel (0) target = $region9
    $region8: #{tpu_custom_call.1} parent=1 // pred_region
      _
    $region9: #{tpu_custom_call.1} parent=1 // pred_fallthru
      _
    // Predicated region
    $region10: #{tpu_custom_call.1} parent=1 // pred_check
      _
    $region11: #{tpu_custom_call.1} parent=1 // pred_check_branch
      %15 = sbr.rel (0) target = $region13
    $region12: #{tpu_custom_call.1} parent=1 // pred_region
      %17 = vsyncadd [#allocation4], 0
      %s19 = sshll.u32 %s2, 4
      %s20 = int_to_ptr.hbm [resolvable:$true] %s19
      %s21 = sshll.u32 [#allocation3], 4
      %s22 = int_to_ptr.vmem [resolvable:$true] %s21
      %24 = dma.hbm_to_vmem [thread:$0]  %s20, 128, %s22, [#allocation4]
    $region13: #{tpu_custom_call.1} parent=1 // pred_fallthru
      _
    // Predicated region
    $region14: #{tpu_custom_call.1} parent=1 // pred_check
      _
    $region15: #{tpu_custom_call.1} parent=1 // pred_check_branch
      %26 = sbr.rel (0) target = $region17
    $region16: #{tpu_custom_call.1} parent=1 // pred_region
      _
    $region17: #{tpu_custom_call.1} parent=1 // pred_fallthru
      _
    // Predicated region
    $region18: #{tpu_custom_call.1} parent=1 // pred_check
      _
    $region19: #{tpu_custom_call.1} parent=1 // pred_check_branch
      %28 = sbr.rel (0) target = $region21
    $region20: #{tpu_custom_call.1} parent=1 // pred_region
      %30 = dma.done [#allocation4], 128
    $region21: #{tpu_custom_call.1} parent=1 // pred_fallthru
      _
    %p31 = scmp.eq.s32.totalorder 0, 0
    // Predicated region
    $region22: #{tpu_custom_call.1} parent=1 // pred_check
      %p32 = pneg %p31
    $region23: #{tpu_custom_call.1} parent=1 // pred_check_branch
      %34 = sbr.rel (%p32) target = $region25
    $region24: #{tpu_custom_call.1} parent=1 // pred_region
      %vm35 = vcmask 64512
      %36 = vst.msk [vmem:[#allocation2] sm:$0xff] %vm35, 0.0
      %37 = vst.msk [vmem:[#allocation2 + $0x8] sm:$0xff] %vm35, 0.0
      %38 = vst.msk [vmem:[#allocation2 + $0x10] sm:$0xff] %vm35, 0.0
      %39 = vst.msk [vmem:[#allocation2 + $0x18] sm:$0xff] %vm35, 0.0
      %40 = vst.msk [vmem:[#allocation2 + $0x20] sm:$0xff] %vm35, 0.0
      %41 = vst.msk [vmem:[#allocation2 + $0x28] sm:$0xff] %vm35, 0.0
      %42 = vst.msk [vmem:[#allocation2 + $0x30] sm:$0xff] %vm35, 0.0
      %43 = vst.msk [vmem:[#allocation2 + $0x38] sm:$0xff] %vm35, 0.0
      %44 = vst.msk [vmem:[#allocation2 + $0x40] sm:$0xff] %vm35, 0.0
      %45 = vst.msk [vmem:[#allocation2 + $0x48] sm:$0xff] %vm35, 0.0
      %46 = vst.msk [vmem:[#allocation2 + $0x50] sm:$0xff] %vm35, 0.0
      %47 = vst.msk [vmem:[#allocation2 + $0x58] sm:$0xff] %vm35, 0.0
      %48 = vst.msk [vmem:[#allocation2 + $0x60] sm:$0xff] %vm35, 0.0
      %49 = vst.msk [vmem:[#allocation2 + $0x68] sm:$0xff] %vm35, 0.0
      %50 = vst.msk [vmem:[#allocation2 + $0x70] sm:$0xff] %vm35, 0.0
      %51 = vst.msk [vmem:[#allocation2 + $0x78] sm:$0xff] %vm35, 0.0
    $region25: #{tpu_custom_call.1} parent=1 // pred_fallthru
      _
    %v52 = vld [vmem:[#allocation2] sm:$0xff]
    %v53 = vld [vmem:[#allocation2 + $0x8] sm:$0xff]
    %v54 = vld [vmem:[#allocation2 + $0x10] sm:$0xff]
    %v55 = vld [vmem:[#allocation2 + $0x18] sm:$0xff]
    %v56 = vld [vmem:[#allocation2 + $0x20] sm:$0xff]
    %v57 = vld [vmem:[#allocation2 + $0x28] sm:$0xff]
    %v58 = vld [vmem:[#allocation2 + $0x30] sm:$0xff]
    %v59 = vld [vmem:[#allocation2 + $0x38] sm:$0xff]
    %v60 = vld [vmem:[#allocation2 + $0x40] sm:$0xff]
    %v61 = vld [vmem:[#allocation2 + $0x48] sm:$0xff]
    %v62 = vld [vmem:[#allocation2 + $0x50] sm:$0xff]
    %v63 = vld [vmem:[#allocation2 + $0x58] sm:$0xff]
    %v64 = vld [vmem:[#allocation2 + $0x60] sm:$0xff]
    %v65 = vld [vmem:[#allocation2 + $0x68] sm:$0xff]
    %v66 = vld [vmem:[#allocation2 + $0x70] sm:$0xff]
    %v67 = vld [vmem:[#allocation2 + $0x78] sm:$0xff]
    %v68 = vld [vmem:[%s0] sm:$0xf]
    %v69 = vld [vmem:[%s0 + $0x4] sm:$0xf]
    %v70 = vld [vmem:[%s0 + $0x8] sm:$0xf]
    %v71 = vld [vmem:[%s0 + $0xc] sm:$0xf]
    %v72 = vld [vmem:[%s0 + $0x10] sm:$0xf]
    %v73 = vld [vmem:[%s0 + $0x14] sm:$0xf]
    %v74 = vld [vmem:[%s0 + $0x18] sm:$0xf]
    %v75 = vld [vmem:[%s0 + $0x1c] sm:$0xf]
    %v76 = vld [vmem:[%s0 + $0x20] sm:$0xf]
    %v77 = vld [vmem:[%s0 + $0x24] sm:$0xf]
    %v78 = vld [vmem:[%s0 + $0x28] sm:$0xf]
    %v79 = vld [vmem:[%s0 + $0x2c] sm:$0xf]
    %v80 = vld [vmem:[%s0 + $0x30] sm:$0xf]
    %v81 = vld [vmem:[%s0 + $0x34] sm:$0xf]
    %v82 = vld [vmem:[%s0 + $0x38] sm:$0xf]
    %v83 = vld [vmem:[%s0 + $0x3c] sm:$0xf]
    %v84 = vld [vmem:[%s1] sm:$0xf]
    %v85 = vld [vmem:[%s1 + $0x4] sm:$0xf]
    %v86 = vld [vmem:[%s1 + $0x8] sm:$0xf]
    %v87 = vld [vmem:[%s1 + $0xc] sm:$0xf]
    %v88 = vld [vmem:[%s1 + $0x10] sm:$0xf]
    %v89 = vld [vmem:[%s1 + $0x14] sm:$0xf]
    %v90 = vld [vmem:[%s1 + $0x18] sm:$0xf]
    %v91 = vld [vmem:[%s1 + $0x1c] sm:$0xf]
    %v92 = vld [vmem:[%s1 + $0x20] sm:$0xf]
    %v93 = vld [vmem:[%s1 + $0x24] sm:$0xf]
    %v94 = vld [vmem:[%s1 + $0x28] sm:$0xf]
    %v95 = vld [vmem:[%s1 + $0x2c] sm:$0xf]
    %v96 = vld [vmem:[%s1 + $0x30] sm:$0xf]
    %v97 = vld [vmem:[%s1 + $0x34] sm:$0xf]
    %v98 = vld [vmem:[%s1 + $0x38] sm:$0xf]
    %v99 = vld [vmem:[%s1 + $0x3c] sm:$0xf]
    %v116 = vunpack.c.l.b16 %v68
    %v117 = vunpack.c.l.b16 %v69
    %v118 = vunpack.c.l.b16 %v70
    %v119 = vunpack.c.l.b16 %v71
    %v120 = vunpack.c.l.b16 %v72
    %v121 = vunpack.c.l.b16 %v73
    %v122 = vunpack.c.l.b16 %v74
    %v123 = vunpack.c.l.b16 %v75
    %v124 = vunpack.c.l.b16 %v76
    %v125 = vunpack.c.l.b16 %v77
    %v126 = vunpack.c.l.b16 %v78
    %v127 = vunpack.c.l.b16 %v79
    %v128 = vunpack.c.l.b16 %v80
    %v129 = vunpack.c.l.b16 %v81
    %v130 = vunpack.c.l.b16 %v82
    %v131 = vunpack.c.l.b16 %v83
    %v132 = vpack.c.b16 %v117, %v116
    %v133 = vpack.c.b16 %v119, %v118
    %v134 = vpack.c.b16 %v121, %v120
    %v135 = vpack.c.b16 %v123, %v122
    %v136 = vpack.c.b16 %v125, %v124
    %v137 = vpack.c.b16 %v127, %v126
    %v138 = vpack.c.b16 %v129, %v128
    %v139 = vpack.c.b16 %v131, %v130
    %v164 = vunpack.c.l.b16 %v84
    %v165 = vunpack.c.l.b16 %v85
    %v166 = vunpack.c.l.b16 %v86
    %v167 = vunpack.c.l.b16 %v87
    %v168 = vunpack.c.l.b16 %v88
    %v169 = vunpack.c.l.b16 %v89
    %v170 = vunpack.c.l.b16 %v90
    %v171 = vunpack.c.l.b16 %v91
    %v172 = vunpack.c.l.b16 %v92
    %v173 = vunpack.c.l.b16 %v93
    %v174 = vunpack.c.l.b16 %v94
    %v175 = vunpack.c.l.b16 %v95
    %v176 = vunpack.c.l.b16 %v96
    %v177 = vunpack.c.l.b16 %v97
    %v178 = vunpack.c.l.b16 %v98
    %v179 = vunpack.c.l.b16 %v99
    %v180 = vpack.c.b16 %v165, %v164
    %v181 = vpack.c.b16 %v167, %v166
    %v182 = vpack.c.b16 %v169, %v168
    %v183 = vpack.c.b16 %v171, %v170
    %v184 = vpack.c.b16 %v173, %v172
    %v185 = vpack.c.b16 %v175, %v174
    %v186 = vpack.c.b16 %v177, %v176
    %v187 = vpack.c.b16 %v179, %v178
    %196 = vmatpush.bf16.msra.mxu0 %v187
    %197 = vmatpush.bf16.msra.mxu0 %v186
    %198 = vmatpush.bf16.msra.mxu0 %v185
    %199 = vmatpush.bf16.msra.mxu0 %v184
    %200 = vmatpush.bf16.msra.mxu0 %v183
    %201 = vmatpush.bf16.msra.mxu0 %v182
    %202 = vmatpush.bf16.msra.mxu0 %v181
    %203 = vmatpush.bf16.msra.mxu0 %v180
    %204 = vmatmul.bf16.gmra.mxu0 %v132
    %v205 = vpop.f32.mrf.mxu0
    %v206 = vadd.f32 0.0, %v205
    %v207 = vpop.f32.mrf.mxu0
    %v208 = vadd.f32 0.0, %v207
    %209 = vmatmul.bf16.gmra.mxu0 %v133
    %v210 = vpop.f32.mrf.mxu0
    %v211 = vadd.f32 0.0, %v210
    %v212 = vpop.f32.mrf.mxu0
    %v213 = vadd.f32 0.0, %v212
    %214 = vmatmul.bf16.gmra.mxu0 %v134
    %v215 = vpop.f32.mrf.mxu0
    %v216 = vadd.f32 0.0, %v215
    %v217 = vpop.f32.mrf.mxu0
    %v218 = vadd.f32 0.0, %v217
    %219 = vmatmul.bf16.gmra.mxu0 %v135
    %v220 = vpop.f32.mrf.mxu0
    %v221 = vadd.f32 0.0, %v220
    %v222 = vpop.f32.mrf.mxu0
    %v223 = vadd.f32 0.0, %v222
    %224 = vmatmul.bf16.gmra.mxu0 %v136
    %v225 = vpop.f32.mrf.mxu0
    %v226 = vadd.f32 0.0, %v225
    %v227 = vpop.f32.mrf.mxu0
    %v228 = vadd.f32 0.0, %v227
    %229 = vmatmul.bf16.gmra.mxu0 %v137
    %v230 = vpop.f32.mrf.mxu0
    %v231 = vadd.f32 0.0, %v230
    %v232 = vpop.f32.mrf.mxu0
    %v233 = vadd.f32 0.0, %v232
    %234 = vmatmul.bf16.gmra.mxu0 %v138
    %v235 = vpop.f32.mrf.mxu0
    %v236 = vadd.f32 0.0, %v235
    %v237 = vpop.f32.mrf.mxu0
    %v238 = vadd.f32 0.0, %v237
    %239 = vmatmul.bf16.gmra.mxu0 %v139
    %v240 = vpop.f32.mrf.mxu0
    %v241 = vadd.f32 0.0, %v240
    %v242 = vpop.f32.mrf.mxu0
    %v243 = vadd.f32 0.0, %v242
    %244 = vdwg.mxu0
    %v245 = vadd.f32 %v52, %v206
    %v246 = vadd.f32 %v53, %v208
    %v247 = vadd.f32 %v54, %v211
    %v248 = vadd.f32 %v55, %v213
    %v249 = vadd.f32 %v56, %v216
    %v250 = vadd.f32 %v57, %v218
    %v251 = vadd.f32 %v58, %v221
    %v252 = vadd.f32 %v59, %v223
    %v253 = vadd.f32 %v60, %v226
    %v254 = vadd.f32 %v61, %v228
    %v255 = vadd.f32 %v62, %v231
    %v256 = vadd.f32 %v63, %v233
    %v257 = vadd.f32 %v64, %v236
    %v258 = vadd.f32 %v65, %v238
    %v259 = vadd.f32 %v66, %v241
    %v260 = vadd.f32 %v67, %v243
    %vm261 = vcmask 64512
    %262 = vst.msk [vmem:[#allocation2] sm:$0xff] %vm261, %v245
    %263 = vst.msk [vmem:[#allocation2 + $0x8] sm:$0xff] %vm261, %v246
    %264 = vst.msk [vmem:[#allocation2 + $0x10] sm:$0xff] %vm261, %v247
    %265 = vst.msk [vmem:[#allocation2 + $0x18] sm:$0xff] %vm261, %v248
    %266 = vst.msk [vmem:[#allocation2 + $0x20] sm:$0xff] %vm261, %v249
    %267 = vst.msk [vmem:[#allocation2 + $0x28] sm:$0xff] %vm261, %v250
    %268 = vst.msk [vmem:[#allocation2 + $0x30] sm:$0xff] %vm261, %v251
    %269 = vst.msk [vmem:[#allocation2 + $0x38] sm:$0xff] %vm261, %v252
    %270 = vst.msk [vmem:[#allocation2 + $0x40] sm:$0xff] %vm261, %v253
    %271 = vst.msk [vmem:[#allocation2 + $0x48] sm:$0xff] %vm261, %v254
    %272 = vst.msk [vmem:[#allocation2 + $0x50] sm:$0xff] %vm261, %v255
    %273 = vst.msk [vmem:[#allocation2 + $0x58] sm:$0xff] %vm261, %v256
    %274 = vst.msk [vmem:[#allocation2 + $0x60] sm:$0xff] %vm261, %v257
    %275 = vst.msk [vmem:[#allocation2 + $0x68] sm:$0xff] %vm261, %v258
    %276 = vst.msk [vmem:[#allocation2 + $0x70] sm:$0xff] %vm261, %v259
    %277 = vst.msk [vmem:[#allocation2 + $0x78] sm:$0xff] %vm261, %v260
    // Predicated region
    $region26: #{tpu_custom_call.1} parent=1 // pred_check
      %p278 = pneg %p31
    $region27: #{tpu_custom_call.1} parent=1 // pred_check_branch
      %280 = sbr.rel (%p278) target = $region29
    $region28: #{tpu_custom_call.1} parent=1 // pred_region
      %v281 = vld [vmem:[#allocation2] sm:$0xff]
      %v282 = vld [vmem:[#allocation2 + $0x8] sm:$0xff]
      %v283 = vld [vmem:[#allocation2 + $0x10] sm:$0xff]
      %v284 = vld [vmem:[#allocation2 + $0x18] sm:$0xff]
      %v285 = vld [vmem:[#allocation2 + $0x20] sm:$0xff]
      %v286 = vld [vmem:[#allocation2 + $0x28] sm:$0xff]
      %v287 = vld [vmem:[#allocation2 + $0x30] sm:$0xff]
      %v288 = vld [vmem:[#allocation2 + $0x38] sm:$0xff]
      %v289 = vld [vmem:[#allocation2 + $0x40] sm:$0xff]
      %v290 = vld [vmem:[#allocation2 + $0x48] sm:$0xff]
      %v291 = vld [vmem:[#allocation2 + $0x50] sm:$0xff]
      %v292 = vld [vmem:[#allocation2 + $0x58] sm:$0xff]
      %v293 = vld [vmem:[#allocation2 + $0x60] sm:$0xff]
      %v294 = vld [vmem:[#allocation2 + $0x68] sm:$0xff]
      %v295 = vld [vmem:[#allocation2 + $0x70] sm:$0xff]
      %v296 = vld [vmem:[#allocation2 + $0x78] sm:$0xff]
      %v297 = vld [vmem:[#allocation3] sm:$0xff]
      %v298 = vld [vmem:[%s3] sm:$0x1]
      %v300 = vperm.slane %v298, 0
      %v303 = vsel %vm261, %v281, 0
      %v306 = vsel %vm261, %v282, 0
      %v309 = vsel %vm261, %v283, 0
      %v312 = vsel %vm261, %v284, 0
      %v315 = vsel %vm261, %v285, 0
      %v318 = vsel %vm261, %v286, 0
      %v321 = vsel %vm261, %v287, 0
      %v324 = vsel %vm261, %v288, 0
      %v327 = vsel %vm261, %v289, 0
      %v330 = vsel %vm261, %v290, 0
      %v333 = vsel %vm261, %v291, 0
      %v336 = vsel %vm261, %v292, 0
      %v339 = vsel %vm261, %v293, 0
      %v342 = vsel %vm261, %v294, 0
      %v345 = vsel %vm261, %v295, 0
      %v348 = vsel %vm261, %v296, 0
      %350 = vmatpush.msra.mxu0 0.0
      %351 = vmatpush.msra.mxu0 0.0
      %352 = vmatpush.msra.mxu0 0.0
      %353 = vmatpush.msra.mxu0 0.0
      %354 = vmatpush.msra.mxu0 0.0
      %355 = vmatpush.msra.mxu0 0.0
      %356 = vmatpush.msra.mxu0 0.0
      %357 = vmatpush.msra.mxu0 0.0
      %358 = vmatpush.msra.mxu0 0.0
      %359 = vmatpush.msra.mxu0 0.0
      %360 = vmatpush.msra.mxu0 0.0
      %361 = vmatpush.msra.mxu0 0.0
      %362 = vmatpush.msra.mxu0 0.0
      %363 = vmatpush.msra.mxu0 0.0
      %364 = vmatpush.msra.mxu0 0.0
      %365 = vmatpush.msra.mxu0 %v297
      %366 = vmatmul.f32.gmra.mxu0 %v303
      %v367 = vpop.f32.mrf.mxu0
      %v368 = vadd.f32 %v300, %v367
      %369 = vmatmul.f32.gmra.mxu0 %v306
      %v370 = vpop.f32.mrf.mxu0
      %v371 = vadd.f32 %v300, %v370
      %372 = vmatmul.f32.gmra.mxu0 %v309
      %v373 = vpop.f32.mrf.mxu0
      %v374 = vadd.f32 %v300, %v373
      %375 = vmatmul.f32.gmra.mxu0 %v312
      %v376 = vpop.f32.mrf.mxu0
      %v377 = vadd.f32 %v300, %v376
      %378 = vmatmul.f32.gmra.mxu0 %v315
      %v379 = vpop.f32.mrf.mxu0
      %v380 = vadd.f32 %v300, %v379
      %381 = vmatmul.f32.gmra.mxu0 %v318
      %v382 = vpop.f32.mrf.mxu0
      %v383 = vadd.f32 %v300, %v382
      %384 = vmatmul.f32.gmra.mxu0 %v321
      %v385 = vpop.f32.mrf.mxu0
      %v386 = vadd.f32 %v300, %v385
      %387 = vmatmul.f32.gmra.mxu0 %v324
      %v388 = vpop.f32.mrf.mxu0
      %v389 = vadd.f32 %v300, %v388
      %390 = vmatmul.f32.gmra.mxu0 %v327
      %v391 = vpop.f32.mrf.mxu0
      %v392 = vadd.f32 %v300, %v391
      %393 = vmatmul.f32.gmra.mxu0 %v330
      %v394 = vpop.f32.mrf.mxu0
      %v395 = vadd.f32 %v300, %v394
      %396 = vmatmul.f32.gmra.mxu0 %v333
      %v397 = vpop.f32.mrf.mxu0
      %v398 = vadd.f32 %v300, %v397
      %399 = vmatmul.f32.gmra.mxu0 %v336
      %v400 = vpop.f32.mrf.mxu0
      %v401 = vadd.f32 %v300, %v400
      %402 = vmatmul.f32.gmra.mxu0 %v339
      %v403 = vpop.f32.mrf.mxu0
      %v404 = vadd.f32 %v300, %v403
      %405 = vmatmul.f32.gmra.mxu0 %v342
      %v406 = vpop.f32.mrf.mxu0
      %v407 = vadd.f32 %v300, %v406
      %408 = vmatmul.f32.gmra.mxu0 %v345
      %v409 = vpop.f32.mrf.mxu0
      %v410 = vadd.f32 %v300, %v409
      %411 = vmatmul.f32.gmra.mxu0 %v348
      %v412 = vpop.f32.mrf.mxu0
      %v413 = vadd.f32 %v300, %v412
      %414 = vdwg.mxu0
      %v415 = vmax.f32 %v368, 0.0
      %v416 = vmax.f32 %v371, 0.0
      %v417 = vmax.f32 %v374, 0.0
      %v418 = vmax.f32 %v377, 0.0
      %v419 = vmax.f32 %v380, 0.0
      %v420 = vmax.f32 %v383, 0.0
      %v421 = vmax.f32 %v386, 0.0
      %v422 = vmax.f32 %v389, 0.0
      %v423 = vmax.f32 %v392, 0.0
      %v424 = vmax.f32 %v395, 0.0
      %v425 = vmax.f32 %v398, 0.0
      %v426 = vmax.f32 %v401, 0.0
      %v427 = vmax.f32 %v404, 0.0
      %v428 = vmax.f32 %v407, 0.0
      %v429 = vmax.f32 %v410, 0.0
      %v430 = vmax.f32 %v413, 0.0
      %v431 = vpack.c.bf16 %v415, %v415
      %v432 = vpack.c.bf16 %v416, %v416
      %v433 = vpack.c.bf16 %v417, %v417
      %v434 = vpack.c.bf16 %v418, %v418
      %v435 = vpack.c.bf16 %v419, %v419
      %v436 = vpack.c.bf16 %v420, %v420
      %v437 = vpack.c.bf16 %v421, %v421
      %v438 = vpack.c.bf16 %v422, %v422
      %v439 = vpack.c.bf16 %v423, %v423
      %v440 = vpack.c.bf16 %v424, %v424
      %v441 = vpack.c.bf16 %v425, %v425
      %v442 = vpack.c.bf16 %v426, %v426
      %v443 = vpack.c.bf16 %v427, %v427
      %v444 = vpack.c.bf16 %v428, %v428
      %v445 = vpack.c.bf16 %v429, %v429
      %v446 = vpack.c.bf16 %v430, %v430
      %vm447 = vcmask 60416
      %448 = vst.msk [vmem:[%s4] sm:$0xf] %vm447, %v431
      %449 = vst.msk [vmem:[%s4 + $0x4] sm:$0xf] %vm447, %v432
      %450 = vst.msk [vmem:[%s4 + $0x8] sm:$0xf] %vm447, %v433
      %451 = vst.msk [vmem:[%s4 + $0xc] sm:$0xf] %vm447, %v434
      %452 = vst.msk [vmem:[%s4 + $0x10] sm:$0xf] %vm447, %v435
      %453 = vst.msk [vmem:[%s4 + $0x14] sm:$0xf] %vm447, %v436
      %454 = vst.msk [vmem:[%s4 + $0x18] sm:$0xf] %vm447, %v437
      %455 = vst.msk [vmem:[%s4 + $0x1c] sm:$0xf] %vm447, %v438
      %456 = vst.msk [vmem:[%s4 + $0x20] sm:$0xf] %vm447, %v439
      %457 = vst.msk [vmem:[%s4 + $0x24] sm:$0xf] %vm447, %v440
      %458 = vst.msk [vmem:[%s4 + $0x28] sm:$0xf] %vm447, %v441
      %459 = vst.msk [vmem:[%s4 + $0x2c] sm:$0xf] %vm447, %v442
      %460 = vst.msk [vmem:[%s4 + $0x30] sm:$0xf] %vm447, %v443
      %461 = vst.msk [vmem:[%s4 + $0x34] sm:$0xf] %vm447, %v444
      %462 = vst.msk [vmem:[%s4 + $0x38] sm:$0xf] %vm447, %v445
      %463 = vst.msk [vmem:[%s4 + $0x3c] sm:$0xf] %vm447, %v446
    $region29: #{tpu_custom_call.1} parent=1 // pred_fallthru
      _
    // Predicated region
    $region30: #{tpu_custom_call.1} parent=1 // pred_check
      _
    $region31: #{tpu_custom_call.1} parent=1 // pred_check_branch
      %465 = sbr.rel (0) target = $region33
    $region32: #{tpu_custom_call.1} parent=1 // pred_region
      _
    $region33: #{tpu_custom_call.1} parent=1 // pred_fallthru
      _
    // Predicated region
    $region34: #{tpu_custom_call.1} parent=1 // pred_check
      _
    $region35: #{tpu_custom_call.1} parent=1 // pred_check_branch
      %467 = sbr.rel (0) target = $region37
    $region36: #{tpu_custom_call.1} parent=1 // pred_region
      _
    $region37: #{tpu_custom_call.1} parent=1 // pred_fallthru
      _
    %468 = vsyncpa [#allocation4], 1

</llo_original>
